<compile_context>
chip_gen: v7x
topology: tpu7x:2x2x1
jax: 0.10.0
libtpu: 0.0.40
codegen_flags: <defaults>
</compile_context>

<pallas_src>
import jax
import jax.numpy as jnp
from jax import lax
from jax.experimental import pallas as pl
from jax.experimental.pallas import tpu as pltpu

# Conservative scoped-VMEM limit: above the 16/32 MiB defaults, below v7x's
# 64 MiB physical capacity (per-generation tile budgets, see _pick_tile).
_VMEM_LIMIT = 48 * 1024 * 1024


def _round_up(x, m):
    return ((x + m - 1) // m) * m


def _pick_tile(s, target=512):
    """Largest tile <= target that divides s (keeps (8,128) tiling legal and
    per-step VMEM bounded); falls back to the full extent for small/odd s."""
    if s <= target:
        return s
    for cand in (512, 256, 128, 64, 32, 16, 8):
        if cand <= target and s % cand == 0:
            return cand
    return s


# --------------------------------------------------------------------------
# Pass 1: KV[b] = K[b]^T @ V[b], accumulated over Sk tiles.
# --------------------------------------------------------------------------
def _make_kv_kernel(compute_dtype):
    def kernel(xk_ref, xv_ref, wk_ref, bk_ref, wv_ref, bv_ref, kv_ref, acc_ref):
        j = pl.program_id(1)

        @pl.when(j == 0)
        def _init():
            acc_ref[...] = jnp.zeros_like(acc_ref)

        xk = xk_ref[0].astype(compute_dtype)          # (tk, dim_in)
        xv = xv_ref[0].astype(compute_dtype)          # (tk, dim_in)
        wk = wk_ref[...].astype(compute_dtype)        # (dim_in, d_pad)
        wv = wv_ref[...].astype(compute_dtype)

        k = jnp.dot(xk, wk, preferred_element_type=jnp.float32) + bk_ref[...]
        v = jnp.dot(xv, wv, preferred_element_type=jnp.float32) + bv_ref[...]

        # KV += K^T @ V: contract the sequence (row) dim of both operands
        # directly on the MXU -- no explicit transpose.
        acc_ref[...] += lax.dot_general(
            k.astype(compute_dtype), v.astype(compute_dtype),
            dimension_numbers=(((0,), (0,)), ((), ())),
            preferred_element_type=jnp.float32)

        @pl.when(j == pl.num_programs(1) - 1)
        def _store():
            kv_ref[0] = acc_ref[...].astype(kv_ref.dtype)

    return kernel


# --------------------------------------------------------------------------
# Pass 2: out[b, tile] = (xq_tile @ Wq + bq) @ KV[b]
# --------------------------------------------------------------------------
def _make_qkv_kernel(compute_dtype):
    def kernel(xq_ref, wq_ref, bq_ref, kv_ref, o_ref):
        xq = xq_ref[0].astype(compute_dtype)          # (tq, dim_in)
        wq = wq_ref[...].astype(compute_dtype)        # (dim_in, d_pad)
        q = jnp.dot(xq, wq, preferred_element_type=jnp.float32) + bq_ref[...]
        kv = kv_ref[0]                                # (d_pad, d_pad), f32
        out = jnp.dot(q.astype(compute_dtype), kv.astype(compute_dtype),
                      preferred_element_type=jnp.float32)
        o_ref[0] = out.astype(o_ref.dtype)

    return kernel


def attention_head_forward(xq, xk, xv, params, *, compute_dtype=jnp.float32):
    """xq:[B,Sq,dim_in], xk/xv:[B,Sk,dim_in] -> [B,Sq,dim_k]."""
    wq_t, bq, wk_t, bk, wv_t, bv = params
    B, Sq, dim_in = xq.shape
    _, Sk, _ = xk.shape
    dim_q = wq_t.shape[1]
    dim_k = wk_t.shape[1]
    assert dim_q == dim_k, "Q @ K^T requires dim_q == dim_k (as in the module)"

    # Lane-dense feature padding (exact: zero-padded columns stay zero).
    d_pad = _round_up(max(dim_q, dim_k), 128)

    def pad_w(w):
        return jnp.pad(w, ((0, 0), (0, d_pad - w.shape[1])))

    def pad_b(b):
        return jnp.pad(b, (0, d_pad - b.shape[0])).reshape(1, d_pad)

    wq_p, wk_p, wv_p = pad_w(wq_t), pad_w(wk_t), pad_w(wv_t)
    bq_p, bk_p, bv_p = pad_b(bq), pad_b(bk), pad_b(bv)

    tk = _pick_tile(Sk)
    tq = _pick_tile(Sq)
    nk = Sk // tk
    nq = Sq // tq

    f32b = 4
    flops_kv = 2 * B * Sk * d_pad * (2 * dim_in + d_pad)
    bytes_kv = f32b * (2 * B * Sk * dim_in
                       + 2 * (dim_in + 1) * d_pad
                       + B * d_pad * d_pad)

    # Pass 1: KV = K^T @ V per batch (reduction over Sk, accumulator resident).
    kv = pl.pallas_call(
        _make_kv_kernel(compute_dtype),
        out_shape=jax.ShapeDtypeStruct((B, d_pad, d_pad), jnp.float32),
        grid=(B, nk),
        in_specs=[
            pl.BlockSpec((1, tk, dim_in), lambda b, j: (b, j, 0)),   # xk
            pl.BlockSpec((1, tk, dim_in), lambda b, j: (b, j, 0)),   # xv
            pl.BlockSpec((dim_in, d_pad), lambda b, j: (0, 0)),      # Wk^T (padded)
            pl.BlockSpec((1, d_pad), lambda b, j: (0, 0)),           # bk
            pl.BlockSpec((dim_in, d_pad), lambda b, j: (0, 0)),      # Wv^T (padded)
            pl.BlockSpec((1, d_pad), lambda b, j: (0, 0)),           # bv
        ],
        out_specs=pl.BlockSpec((1, d_pad, d_pad), lambda b, j: (b, 0, 0)),
        scratch_shapes=[pltpu.VMEM((d_pad, d_pad), jnp.float32)],
        compiler_params=pltpu.CompilerParams(
            dimension_semantics=("parallel", "arbitrary"),
            vmem_limit_bytes=_VMEM_LIMIT),
        cost_estimate=pl.CostEstimate(
            flops=flops_kv, transcendentals=0, bytes_accessed=bytes_kv),
    )(xk, xv, wk_p, bk_p, wv_p, bv_p)

    flops_q = 2 * B * Sq * d_pad * (dim_in + d_pad)
    bytes_q = f32b * (B * Sq * dim_in + (dim_in + 1) * d_pad
                      + B * d_pad * d_pad + B * Sq * d_pad)

    # Pass 2: out = Q @ KV per (batch, Sq tile); fully parallel grid.
    out_pad = pl.pallas_call(
        _make_qkv_kernel(compute_dtype),
        out_shape=jax.ShapeDtypeStruct((B, Sq, d_pad), jnp.float32),
        grid=(B, nq),
        in_specs=[
            pl.BlockSpec((1, tq, dim_in), lambda b, i: (b, i, 0)),   # xq
            pl.BlockSpec((dim_in, d_pad), lambda b, i: (0, 0)),      # Wq^T (padded)
            pl.BlockSpec((1, d_pad), lambda b, i: (0, 0)),           # bq
            pl.BlockSpec((1, d_pad, d_pad), lambda b, i: (b, 0, 0)), # KV
        ],
        out_specs=pl.BlockSpec((1, tq, d_pad), lambda b, i: (b, i, 0)),
        compiler_params=pltpu.CompilerParams(
            dimension_semantics=("parallel", "parallel"),
            vmem_limit_bytes=_VMEM_LIMIT),
        cost_estimate=pl.CostEstimate(
            flops=flops_q, transcendentals=0, bytes_accessed=bytes_q),
    )(xq, wq_p, bq_p, kv)

    return out_pad[:, :, :dim_k]


def init_params(key, dim_in, dim_q, dim_k):
    """Deterministic nn.Linear-style init (uniform +/- 1/sqrt(fan_in)).
    Weights stored pre-transposed as [dim_in, dim_out]."""
    ks = jax.random.split(key, 6)
    bound = 1.0 / (dim_in ** 0.5)
    u = lambda k, shape: jax.random.uniform(k, shape, jnp.float32, -bound, bound)
    wq_t = u(ks[0], (dim_in, dim_q))
    bq = u(ks[1], (dim_q,))
    wk_t = u(ks[2], (dim_in, dim_k))
    bk = u(ks[3], (dim_k,))
    wv_t = u(ks[4], (dim_in, dim_k))
    bv = u(ks[5], (dim_k,))
    return (wq_t, bq, wk_t, bk, wv_t, bv)


def reference_forward(xq, xk, xv, params):
    """Pure-JAX reference mirroring the PyTorch module (incl. its dead softmax)."""
    wq_t, bq, wk_t, bk, wv_t, bv = params
    hp = lax.Precision.HIGHEST
    q = jnp.einsum("bsi,io->bso", xq, wq_t, precision=hp) + bq
    k = jnp.einsum("bsi,io->bso", xk, wk_t, precision=hp) + bk
    v = jnp.einsum("bsi,io->bso", xv, wv_t, precision=hp) + bv
    temp = jnp.einsum("bqd,bkd->bqk", q, k, precision=hp)
    _ = jax.nn.softmax(temp / (q.shape[-1] ** 0.5), axis=-1)  # dead code, as in reference
    return jnp.einsum("bqk,bkd->bqd", temp, v, precision=hp)


if __name__ == "__main__":
    key = jax.random.PRNGKey(0)
    k_p, k_q, k_k, k_v = jax.random.split(key, 4)

    B, Sq, Sk = 2, 8, 8
    dim_in, dim_q, dim_k = 32, 16, 16   # dim_q == dim_k required by Q @ K^T

    params = init_params(k_p, dim_in, dim_q, dim_k)
    xq = jax.random.normal(k_q, (B, Sq, dim_in), jnp.float32)
    xk = jax.random.normal(k_k, (B, Sk, dim_in), jnp.float32)
    xv = jax.random.normal(k_v, (B, Sk, dim_in), jnp.float32)

    ref = reference_forward(xq, xk, xv, params)

    # f32 MXU operands (exact path, tight tolerance).
    out = attention_head_forward(xq, xk, xv, params)
    out = jax.block_until_ready(out)
    assert out.shape == (B, Sq, dim_k)
    assert jnp.allclose(out, ref, atol=1e-3, rtol=1e-3), "f32 kernel mismatch vs reference"

    # bf16 MXU operands, f32 accumulation (native MXU path on v6e/v7x).
    out_bf16 = attention_head_forward(xq, xk, xv, params, compute_dtype=jnp.bfloat16)
    out_bf16 = jax.block_until_ready(out_bf16)
    assert jnp.allclose(out_bf16, ref, atol=5e-2, rtol=5e-2), "bf16 kernel mismatch vs reference"

    print("KERNEL_OK")
</pallas_src>

<mosaic_0001>
module attributes {stable_mosaic.version = 11 : i64} {
  func.func @kernel(%arg0: i32, %arg1: i32, %arg2: memref<1x8x32xf32, #tpu.memory_space<vmem>>, %arg3: memref<1x8x32xf32, #tpu.memory_space<vmem>>, %arg4: memref<32x128xf32, #tpu.memory_space<vmem>>, %arg5: memref<1x128xf32, #tpu.memory_space<vmem>>, %arg6: memref<32x128xf32, #tpu.memory_space<vmem>>, %arg7: memref<1x128xf32, #tpu.memory_space<vmem>>, %arg8: memref<1x128x128xf32, #tpu.memory_space<vmem>>, %arg9: memref<128x128xf32, #tpu.memory_space<vmem>>) attributes {dimension_semantics = [#tpu.dimension_semantics<parallel>, #tpu.dimension_semantics<arbitrary>], iteration_bounds = array<i64: 2, 1>, scalar_prefetch = 0 : i64, scratch_operands = 1 : i64, tpu.core_type = #tpu.core_type<tc>, window_params = [{transform_indices = @transform_0, window_bounds = array<i64: 1, 8, 32>}, {transform_indices = @transform_1, window_bounds = array<i64: 1, 8, 32>}, {pipeline_mode = #tpu.pipeline_mode<synchronous>, transform_indices = @transform_2, window_bounds = array<i64: 32, 128>}, {pipeline_mode = #tpu.pipeline_mode<synchronous>, transform_indices = @transform_3, window_bounds = array<i64: 1, 128>}, {pipeline_mode = #tpu.pipeline_mode<synchronous>, transform_indices = @transform_4, window_bounds = array<i64: 32, 128>}, {pipeline_mode = #tpu.pipeline_mode<synchronous>, transform_indices = @transform_5, window_bounds = array<i64: 1, 128>}, {transform_indices = @transform_6, window_bounds = array<i64: 1, 128, 128>}]} {
    %c0_i32 = arith.constant 0 : i32
    %0 = arith.cmpi eq, %arg1, %c0_i32 : i32
    %1 = arith.extui %0 : i1 to i32
    %c0_i32_0 = arith.constant 0 : i32
    %2 = arith.cmpi ne, %1, %c0_i32_0 : i32
    scf.if %2 {
      %cst_22 = arith.constant 0.000000e+00 : f32
      %24 = vector.broadcast %cst_22 : f32 to vector<128x128xf32>
      %c0_23 = arith.constant 0 : index
      %c0_24 = arith.constant 0 : index
      %25 = vector.load %arg9[%c0_23, %c0_24] : memref<128x128xf32, #tpu.memory_space<vmem>>, vector<128x128xf32>
      tpu.vector_store %arg9[%c0_23, %c0_24], %24 {strides = array<i32>} : memref<128x128xf32, #tpu.memory_space<vmem>>, vector<128x128xf32>,
    } else {
    }
    %c0 = arith.constant 0 : index
    %c0_1 = arith.constant 0 : index
    %c0_2 = arith.constant 0 : index
    %3 = vector.load %arg2[%c0, %c0_1, %c0_2] : memref<1x8x32xf32, #tpu.memory_space<vmem>>, vector<1x8x32xf32>
    %4 = vector.shape_cast %3 : vector<1x8x32xf32> to vector<8x32xf32>
    %c0_3 = arith.constant 0 : index
    %c0_4 = arith.constant 0 : index
    %c0_5 = arith.constant 0 : index
    %5 = vector.load %arg3[%c0_3, %c0_4, %c0_5] : memref<1x8x32xf32, #tpu.memory_space<vmem>>, vector<1x8x32xf32>
    %6 = vector.shape_cast %5 : vector<1x8x32xf32> to vector<8x32xf32>
    %c0_6 = arith.constant 0 : index
    %c0_7 = arith.constant 0 : index
    %7 = vector.load %arg4[%c0_6, %c0_7] : memref<32x128xf32, #tpu.memory_space<vmem>>, vector<32x128xf32>
    %c0_8 = arith.constant 0 : index
    %c0_9 = arith.constant 0 : index
    %8 = vector.load %arg6[%c0_8, %c0_9] : memref<32x128xf32, #tpu.memory_space<vmem>>, vector<32x128xf32>
    %cst = arith.constant dense<0.000000e+00> : vector<8x128xf32>
    %9 = tpu.matmul %4, %7, %cst {dimension_numbers = #tpu.dot_dimension_numbers<[1], [0], [0], [1], [0, 0, 1, 1], [], []>} : vector<8x32xf32>, vector<32x128xf32>, vector<8x128xf32> -> vector<8x128xf32>
    %c0_10 = arith.constant 0 : index
    %c0_11 = arith.constant 0 : index
    %10 = vector.load %arg5[%c0_10, %c0_11] : memref<1x128xf32, #tpu.memory_space<vmem>>, vector<1x128xf32>
    %11 = vector.broadcast %10 : vector<1x128xf32> to vector<8x128xf32>
    %12 = arith.addf %9, %11 : vector<8x128xf32>
    %cst_12 = arith.constant dense<0.000000e+00> : vector<8x128xf32>
    %13 = tpu.matmul %6, %8, %cst_12 {dimension_numbers = #tpu.dot_dimension_numbers<[1], [0], [0], [1], [0, 0, 1, 1], [], []>} : vector<8x32xf32>, vector<32x128xf32>, vector<8x128xf32> -> vector<8x128xf32>
    %c0_13 = arith.constant 0 : index
    %c0_14 = arith.constant 0 : index
    %14 = vector.load %arg7[%c0_13, %c0_14] : memref<1x128xf32, #tpu.memory_space<vmem>>, vector<1x128xf32>
    %15 = vector.broadcast %14 : vector<1x128xf32> to vector<8x128xf32>
    %16 = arith.addf %13, %15 : vector<8x128xf32>
    %c0_15 = arith.constant 0 : index
    %c0_16 = arith.constant 0 : index
    %17 = vector.load %arg9[%c0_15, %c0_16] : memref<128x128xf32, #tpu.memory_space<vmem>>, vector<128x128xf32>
    %cst_17 = arith.constant dense<0.000000e+00> : vector<128x128xf32>
    %18 = tpu.matmul %12, %16, %cst_17 {dimension_numbers = #tpu.dot_dimension_numbers<[0], [0], [1], [1], [0, 1, 1, 1], [], []>} : vector<8x128xf32>, vector<8x128xf32>, vector<128x128xf32> -> vector<128x128xf32>
    %19 = arith.addf %17, %18 : vector<128x128xf32>
    %c0_18 = arith.constant 0 : index
    %c0_19 = arith.constant 0 : index
    %20 = vector.load %arg9[%c0_18, %c0_19] : memref<128x128xf32, #tpu.memory_space<vmem>>, vector<128x128xf32>
    tpu.vector_store %arg9[%c0_18, %c0_19], %19 {strides = array<i32>} : memref<128x128xf32, #tpu.memory_space<vmem>>, vector<128x128xf32>,
    %c0_i32_20 = arith.constant 0 : i32
    %21 = arith.cmpi eq, %arg1, %c0_i32_20 : i32
    %22 = arith.extui %21 : i1 to i32
    %c0_i32_21 = arith.constant 0 : i32
    %23 = arith.cmpi ne, %22, %c0_i32_21 : i32
    scf.if %23 {
      %c0_22 = arith.constant 0 : index
      %c0_23 = arith.constant 0 : index
      %24 = vector.load %arg9[%c0_22, %c0_23] : memref<128x128xf32, #tpu.memory_space<vmem>>, vector<128x128xf32>
      %c0_24 = arith.constant 0 : index
      %c0_25 = arith.constant 0 : index
      %c0_26 = arith.constant 0 : index
      %25 = vector.load %arg8[%c0_24, %c0_25, %c0_26] : memref<1x128x128xf32, #tpu.memory_space<vmem>>, vector<1x128x128xf32>
      %26 = vector.shape_cast %25 : vector<1x128x128xf32> to vector<128x128xf32>
      %27 = vector.shape_cast %24 : vector<128x128xf32> to vector<1x128x128xf32>
      tpu.vector_store %arg8[%c0_24, %c0_25, %c0_26], %27 {strides = array<i32>} : memref<1x128x128xf32, #tpu.memory_space<vmem>>, vector<1x128x128xf32>,
    } else {
    }
    return
  }
  func.func @transform_0(%arg0: i32, %arg1: i32) -> (i32, i32, i32) {
    %c0_i32 = arith.constant 0 : i32
    %c0_i32_0 = arith.constant 0 : i32
    return %arg0, %arg1, %c0_i32 : i32, i32, i32
  }
  func.func @transform_1(%arg0: i32, %arg1: i32) -> (i32, i32, i32) {
    %c0_i32 = arith.constant 0 : i32
    %c0_i32_0 = arith.constant 0 : i32
    return %arg0, %arg1, %c0_i32 : i32, i32, i32
  }
  func.func @transform_2(%arg0: i32, %arg1: i32) -> (i32, i32) {
    %c0_i32 = arith.constant 0 : i32
    %c0_i32_0 = arith.constant 0 : i32
    %c0_i32_1 = arith.constant 0 : i32
    return %c0_i32, %c0_i32_0 : i32, i32
  }
  func.func @transform_3(%arg0: i32, %arg1: i32) -> (i32, i32) {
    %c0_i32 = arith.constant 0 : i32
    %c0_i32_0 = arith.constant 0 : i32
    %c0_i32_1 = arith.constant 0 : i32
    return %c0_i32, %c0_i32_0 : i32, i32
  }
  func.func @transform_4(%arg0: i32, %arg1: i32) -> (i32, i32) {
    %c0_i32 = arith.constant 0 : i32
    %c0_i32_0 = arith.constant 0 : i32
    %c0_i32_1 = arith.constant 0 : i32
    return %c0_i32, %c0_i32_0 : i32, i32
  }
  func.func @transform_5(%arg0: i32, %arg1: i32) -> (i32, i32) {
    %c0_i32 = arith.constant 0 : i32
    %c0_i32_0 = arith.constant 0 : i32
    %c0_i32_1 = arith.constant 0 : i32
    return %c0_i32, %c0_i32_0 : i32, i32
  }
  func.func @transform_6(%arg0: i32, %arg1: i32) -> (i32, i32, i32) {
    %c0_i32 = arith.constant 0 : i32
    %c0_i32_0 = arith.constant 0 : i32
    %c0_i32_1 = arith.constant 0 : i32
    return %arg0, %c0_i32, %c0_i32_0 : i32, i32, i32
  }
}

</mosaic_0001>

<llo_original>
// kernel: tpu_custom_call.1
$region0: #{tpu_custom_call.1}
  #allocation0 [shape = 'u32[]', space=smem, size = 0x4, offset = 0x4, fixed_abs, tag = 'smem constant byte address 0x4 - core index']
  #allocation1 [shape = 'u32[144,128]{1,0:T(1,128)}', space=vmem, size = 0x12000, scoped, tag = 'internal scratch']
  #allocation2 [shape = 'f32[128,128]{1,0:T(8,128)}', space=vmem, size = 0x10000, scoped, tag = 'scratch operand']
  %s0 = inlined_call_operand.hbm [shape: f32[2,8,32], index: 0, kind: input, shape index: {}]
  %s1 = inlined_call_operand.hbm [shape: f32[2,8,32], index: 1, kind: input, shape index: {}]
  %s2 = inlined_call_operand.hbm [shape: f32[32,128], index: 2, kind: input, shape index: {}]
  %s3 = inlined_call_operand.vmem [shape: f32[1,128], index: 3, kind: input, shape index: {}]
  %s4 = inlined_call_operand.hbm [shape: f32[32,128], index: 4, kind: input, shape index: {}]
  %s5 = inlined_call_operand.vmem [shape: f32[1,128], index: 5, kind: input, shape index: {}]
  %s6 = inlined_call_operand.hbm [shape: f32[2,128,128], index: 6, kind: output, shape index: {}]
  %s7 = sld [smem:[#allocation0]]
  $region81: #{tpu_custom_call.1} parent=0
    _
  %s9 = ssub.s32 1, %s7
  %s10 = scalar_select 0, %s9, %s7
  $region1: #{tpu_custom_call.1} parent=0
    #allocation3 [shape = 'u8[8192]{0}', space=vmem, size = 0x2000, scoped, tag = 'input window, operand 0']
    #allocation4 [shape = 's32[2]{0}', space=sflag, size = 0x8, scoped, tag = 'scoped memory for tpu_custom_call.1']
    #allocation5 [shape = 's32[2]{0}', space=sflag, size = 0x8, scoped, tag = 'scoped memory for tpu_custom_call.1']
    #allocation6 [shape = 'u8[8192]{0}', space=vmem, size = 0x2000, scoped, tag = 'input window, operand 1']
    #allocation7 [shape = 's32[2]{0}', space=sflag, size = 0x8, scoped, tag = 'scoped memory for tpu_custom_call.1']
    #allocation8 [shape = 'u8[16384]{0}', space=vmem, size = 0x4000, scoped, tag = 'input window, operand 2, single buffered']
    #allocation9 [shape = 'u8[16384]{0}', space=vmem, size = 0x4000, scoped, tag = 'input window, operand 4, single buffered']
    #allocation10 [shape = 's32[1]{0}', space=sflag, size = 0x4, scoped, tag = 'scoped memory for tpu_custom_call.1']
    #allocation11 [shape = 'u8[131072]{0}', space=vmem, size = 0x20000, scoped, tag = 'output window, operand 0']
    %11 = vsyncpa [#allocation4], 0
    %s12 = scalar_lea.sflag [#allocation4], 1
    %13 = vsyncpa %s12, 0
    %14 = vsyncpa [#allocation7], 0
    %s15 = scalar_lea.sflag [#allocation7], 1
    %16 = vsyncpa %s15, 0
    %17 = vsyncpa [#allocation10], 0
    %18 = vsyncpa [#allocation5], 0
    %s19 = scalar_lea.sflag [#allocation5], 1
    %20 = vsyncpa %s19, 0
    loop: start=0, step=1, limit=4
    $region2: #{tpu_custom_call.1} parent=1 // loop_pre_header
      _
    $region3: #{tpu_custom_call.1} parent=1 // loop_header
      %s22 = sphi 0, %s26
      %p23 = scmp.ge.s32.totalorder %s22, 4
      %s29 = sphi 0, %s41
      %s30 = sphi 0, %s37
      %s31 = sphi 0, %s29
      %s32 = sphi 0, %s30
      %s33 = sphi 0, %s31
      %s34 = sphi 0, %s32
      %s46 = sphi 0, %s48
      %s49 = sphi 0, %s46
      %s50 = sphi 0, %s49
      %s66 = sphi 0, %s50
      %s74 = sphi 0, %s76
      %s77 = sphi 0, %s74
      %s78 = sphi 0, %s77
      %s94 = sphi 0, %s78
      %s98 = sphi 0, %s98
      %s100 = sphi 0, %s98
      %s101 = sphi 0, %s100
      %s115 = sphi 0, %s101
      %s119 = sphi 0, %s119
      %s121 = sphi 0, %s119
      %s122 = sphi 0, %s121
      %s136 = sphi 0, %s122
      %s140 = sphi 0, %s140
      %s142 = sphi 0, %s140
      %s143 = sphi 0, %s142
      %s157 = sphi 0, %s143
      %s161 = sphi 0, %s161
      %s163 = sphi 0, %s161
      %s164 = sphi 0, %s163
      %s178 = sphi 0, %s164
      %s184 = sphi 0, %s186
      %s187 = sphi 0, %s184
      %s188 = sphi 0, %s187
      %s204 = sphi 0, %s188
    $region4: #{tpu_custom_call.1} parent=1 // loop_header_branch
      %25 = sbr.rel (%p23) target = $region8
    $region5: #{tpu_custom_call.1} parent=1 // loop_body
      %s27 = ssub.s32 %s22, 1
      %s28 = ssub.s32 %s22, 2
      %s35 = sadd.s32 1, %s30
      %p36 = scmp.ge.s32.totalorder %s35, 1
      %s37 = scalar_select %p36, 0, %s35
      %s38 = sadd.s32 1, %s29
      %s39 = scalar_select %p36, %s38, %s29
      %p40 = scmp.ge.s32.totalorder %s39, 2
      %s41 = scalar_select %p40, 0, %s39
      %s42 = ssub.s32 %s29, %s41
      %s43 = ssub.s32 %s30, %s37
      %s44 = sor.u32 %s42, %s43
      %p45 = scmp.eq.s32.totalorder %s44, 0
      %s47 = sadd.s32 %s46, 1
      %s48 = scalar_select %p45, %s46, %s47
      %p51 = pneg %p45
      %p52 = scmp.eq.s32.totalorder %s22, 1
      %p53 = por %p51, %p52
      %p54 = scmp.ne.s32.totalorder %s46, %s49
      %p55 = scmp.eq.s32.totalorder %s22, 0
      %p56 = por %p54, %p55
      %p57 = scmp.ne.s32.totalorder %s46, %s49
      %p58 = scmp.eq.s32.totalorder %s27, 1
      %p59 = por %p57, %p58
      %p60 = scmp.ne.s32.totalorder %s49, %s50
      %p61 = scmp.eq.s32.totalorder %s27, 0
      %p62 = por %p60, %p61
      %p63 = scmp.ne.s32.totalorder %s49, %s50
      %p64 = scmp.eq.s32.totalorder %s28, 1
      %p65 = por %p63, %p64
      %p67 = scmp.ne.s32.totalorder %s50, %s66
      %p68 = scmp.eq.s32.totalorder %s28, 0
      %p69 = por %p67, %p68
      %s70 = ssub.s32 %s29, %s41
      %s71 = ssub.s32 %s30, %s37
      %s72 = sor.u32 %s70, %s71
      %p73 = scmp.eq.s32.totalorder %s72, 0
      %s75 = sadd.s32 %s74, 1
      %s76 = scalar_select %p73, %s74, %s75
      %p79 = pneg %p73
      %p80 = scmp.eq.s32.totalorder %s22, 1
      %p81 = por %p79, %p80
      %p82 = scmp.ne.s32.totalorder %s74, %s77
      %p83 = scmp.eq.s32.totalorder %s22, 0
      %p84 = por %p82, %p83
      %p85 = scmp.ne.s32.totalorder %s74, %s77
      %p86 = scmp.eq.s32.totalorder %s27, 1
      %p87 = por %p85, %p86
      %p88 = scmp.ne.s32.totalorder %s77, %s78
      %p89 = scmp.eq.s32.totalorder %s27, 0
      %p90 = por %p88, %p89
      %p91 = scmp.ne.s32.totalorder %s77, %s78
      %p92 = scmp.eq.s32.totalorder %s28, 1
      %p93 = por %p91, %p92
      %p95 = scmp.ne.s32.totalorder %s78, %s94
      %p96 = scmp.eq.s32.totalorder %s28, 0
      %p97 = por %p95, %p96
      %s99 = sadd.s32 %s98, 1
      %p102 = scmp.eq.s32.totalorder %s22, 1
      %p103 = scmp.ne.s32.totalorder %s98, %s100
      %p104 = scmp.eq.s32.totalorder %s22, 0
      %p105 = por %p103, %p104
      %p106 = scmp.ne.s32.totalorder %s98, %s100
      %p107 = scmp.eq.s32.totalorder %s27, 1
      %p108 = por %p106, %p107
      %p109 = scmp.ne.s32.totalorder %s100, %s101
      %p110 = scmp.eq.s32.totalorder %s27, 0
      %p111 = por %p109, %p110
      %p112 = scmp.ne.s32.totalorder %s100, %s101
      %p113 = scmp.eq.s32.totalorder %s28, 1
      %p114 = por %p112, %p113
      %p116 = scmp.ne.s32.totalorder %s101, %s115
      %p117 = scmp.eq.s32.totalorder %s28, 0
      %p118 = por %p116, %p117
      %s120 = sadd.s32 %s119, 1
      %p123 = scmp.eq.s32.totalorder %s22, 1
      %p124 = scmp.ne.s32.totalorder %s119, %s121
      %p125 = scmp.eq.s32.totalorder %s22, 0
      %p126 = por %p124, %p125
      %p127 = scmp.ne.s32.totalorder %s119, %s121
      %p128 = scmp.eq.s32.totalorder %s27, 1
      %p129 = por %p127, %p128
      %p130 = scmp.ne.s32.totalorder %s121, %s122
      %p131 = scmp.eq.s32.totalorder %s27, 0
      %p132 = por %p130, %p131
      %p133 = scmp.ne.s32.totalorder %s121, %s122
      %p134 = scmp.eq.s32.totalorder %s28, 1
      %p135 = por %p133, %p134
      %p137 = scmp.ne.s32.totalorder %s122, %s136
      %p138 = scmp.eq.s32.totalorder %s28, 0
      %p139 = por %p137, %p138
      %s141 = sadd.s32 %s140, 1
      %p144 = scmp.eq.s32.totalorder %s22, 1
      %p145 = scmp.ne.s32.totalorder %s140, %s142
      %p146 = scmp.eq.s32.totalorder %s22, 0
      %p147 = por %p145, %p146
      %p148 = scmp.ne.s32.totalorder %s140, %s142
      %p149 = scmp.eq.s32.totalorder %s27, 1
      %p150 = por %p148, %p149
      %p151 = scmp.ne.s32.totalorder %s142, %s143
      %p152 = scmp.eq.s32.totalorder %s27, 0
      %p153 = por %p151, %p152
      %p154 = scmp.ne.s32.totalorder %s142, %s143
      %p155 = scmp.eq.s32.totalorder %s28, 1
      %p156 = por %p154, %p155
      %p158 = scmp.ne.s32.totalorder %s143, %s157
      %p159 = scmp.eq.s32.totalorder %s28, 0
      %p160 = por %p158, %p159
      %s162 = sadd.s32 %s161, 1
      %p165 = scmp.eq.s32.totalorder %s22, 1
      %p166 = scmp.ne.s32.totalorder %s161, %s163
      %p167 = scmp.eq.s32.totalorder %s22, 0
      %p168 = por %p166, %p167
      %p169 = scmp.ne.s32.totalorder %s161, %s163
      %p170 = scmp.eq.s32.totalorder %s27, 1
      %p171 = por %p169, %p170
      %p172 = scmp.ne.s32.totalorder %s163, %s164
      %p173 = scmp.eq.s32.totalorder %s27, 0
      %p174 = por %p172, %p173
      %p175 = scmp.ne.s32.totalorder %s163, %s164
      %p176 = scmp.eq.s32.totalorder %s28, 1
      %p177 = por %p175, %p176
      %p179 = scmp.ne.s32.totalorder %s164, %s178
      %p180 = scmp.eq.s32.totalorder %s28, 0
      %p181 = por %p179, %p180
      %s182 = ssub.s32 %s29, %s41
      %p183 = scmp.eq.s32.totalorder %s182, 0
      %s185 = sadd.s32 %s184, 1
      %s186 = scalar_select %p183, %s184, %s185
      %p189 = pneg %p183
      %p190 = scmp.eq.s32.totalorder %s22, 1
      %p191 = por %p189, %p190
      %p192 = scmp.ne.s32.totalorder %s184, %s187
      %p193 = scmp.eq.s32.totalorder %s22, 0
      %p194 = por %p192, %p193
      %p195 = scmp.ne.s32.totalorder %s184, %s187
      %p196 = scmp.eq.s32.totalorder %s27, 1
      %p197 = por %p195, %p196
      %p198 = scmp.ne.s32.totalorder %s187, %s188
      %p199 = scmp.eq.s32.totalorder %s27, 0
      %p200 = por %p198, %p199
      %p201 = scmp.ne.s32.totalorder %s187, %s188
      %p202 = scmp.eq.s32.totalorder %s28, 1
      %p203 = por %p201, %p202
      %p205 = scmp.ne.s32.totalorder %s188, %s204
      %p206 = scmp.eq.s32.totalorder %s28, 0
      %p207 = por %p205, %p206
      %p208 = scmp.le.s32.totalorder 1, %s22
      %p209 = scmp.lt.s32.totalorder %s22, 3
      %p210 = pnand %p208, %p209
      %p211 = pneg %p210
      // Predicated region
      $region9: #{tpu_custom_call.1} parent=5 // pred_check
        _
      $region10: #{tpu_custom_call.1} parent=5 // pred_check_branch
        %213 = sbr.rel (%p210) target = $region12
      $region11: #{tpu_custom_call.1} parent=5 // pred_region
        %s214 = ssub.s32 %s22, 1
        // Predicated region
        $region13: #{tpu_custom_call.1} parent=11 // pred_check
          %p215 = pneg %p111
        $region14: #{tpu_custom_call.1} parent=11 // pred_check_branch
          %217 = sbr.rel (%p215) target = $region16
        $region15: #{tpu_custom_call.1} parent=11 // pred_region
          %s219 = ssub.s32 512, 512
          %220 = vsyncadd [#allocation7], %s219
          %s221 = sshll.u32 [#allocation8], 4
          %s222 = int_to_ptr.vmem [resolvable:$true] %s221
          %227 = dma.hbm_to_vmem [thread:$0]  %s2, 512, %s222, [#allocation7], 128, 128, 8
        $region16: #{tpu_custom_call.1} parent=11 // pred_fallthru
          _
        // Predicated region
        $region17: #{tpu_custom_call.1} parent=11 // pred_check
          %p228 = pneg %p132
        $region18: #{tpu_custom_call.1} parent=11 // pred_check_branch
          %230 = sbr.rel (%p228) target = $region20
        $region19: #{tpu_custom_call.1} parent=11 // pred_region
          _
        $region20: #{tpu_custom_call.1} parent=11 // pred_fallthru
          _
        // Predicated region
        $region21: #{tpu_custom_call.1} parent=11 // pred_check
          %p231 = pneg %p153
        $region22: #{tpu_custom_call.1} parent=11 // pred_check_branch
          %233 = sbr.rel (%p231) target = $region24
        $region23: #{tpu_custom_call.1} parent=11 // pred_region
          %s235 = ssub.s32 512, 512
          %236 = vsyncadd [#allocation10], %s235
          %s237 = sshll.u32 [#allocation9], 4
          %s238 = int_to_ptr.vmem [resolvable:$true] %s237
          %243 = dma.hbm_to_vmem [thread:$0]  %s4, 512, %s238, [#allocation10], 128, 128, 8
        $region24: #{tpu_custom_call.1} parent=11 // pred_fallthru
          _
        // Predicated region
        $region25: #{tpu_custom_call.1} parent=11 // pred_check
          %p244 = pneg %p174
        $region26: #{tpu_custom_call.1} parent=11 // pred_check_branch
          %246 = sbr.rel (%p244) target = $region28
        $region27: #{tpu_custom_call.1} parent=11 // pred_region
          _
        $region28: #{tpu_custom_call.1} parent=11 // pred_fallthru
          _
      $region12: #{tpu_custom_call.1} parent=5 // pred_fallthru
        _
      %p247 = scmp.lt.s32.totalorder %s22, 2
      // Predicated region
      $region29: #{tpu_custom_call.1} parent=5 // pred_check
        %p248 = pneg %p247
      $region30: #{tpu_custom_call.1} parent=5 // pred_check_branch
        %250 = sbr.rel (%p248) target = $region32
      $region31: #{tpu_custom_call.1} parent=5 // pred_region
        // Predicated region
        $region33: #{tpu_custom_call.1} parent=31 // pred_check
          %p251 = pneg %p56
        $region34: #{tpu_custom_call.1} parent=31 // pred_check_branch
          %253 = sbr.rel (%p251) target = $region36
        $region35: #{tpu_custom_call.1} parent=31 // pred_region
          %s254 = sand.u32 %s46, 1
          %s255 = scalar_lea.sflag [#allocation4], %s254
          %s256 = sand.u32 %s46, 1
          %s257 = smul.addr %s256, 8
          %s258 = scalar_lea.vmem [#allocation3], %s257
          %s260 = ssub.s32 128, 128
          %261 = vsyncadd %s255, %s260
          %s262 = sadd.s32 %s30, %s29
          %s263 = smul.addr %s262, 128
          %s264 = scalar_lea.hbm %s0, %s263
          %s266 = sshll.u32 %s258, 4
          %s267 = int_to_ptr.vmem [resolvable:$true] %s266
          %269 = dma.hbm_to_vmem [thread:$0]  %s264, 128, %s267, %s255
        $region36: #{tpu_custom_call.1} parent=31 // pred_fallthru
          _
        // Predicated region
        $region37: #{tpu_custom_call.1} parent=31 // pred_check
          %p270 = pneg %p84
        $region38: #{tpu_custom_call.1} parent=31 // pred_check_branch
          %272 = sbr.rel (%p270) target = $region40
        $region39: #{tpu_custom_call.1} parent=31 // pred_region
          %s273 = sand.u32 %s22, 1
          %s274 = scalar_lea.sflag [#allocation7], %s273
          %s275 = sand.u32 %s74, 1
          %s276 = smul.addr %s275, 8
          %s277 = scalar_lea.vmem [#allocation6], %s276
          %s279 = ssub.s32 128, 128
          %280 = vsyncadd %s274, %s279
          %s281 = sadd.s32 %s30, %s29
          %s282 = smul.addr %s281, 128
          %s283 = scalar_lea.hbm %s1, %s282
          %s285 = sshll.u32 %s277, 4
          %s286 = int_to_ptr.vmem [resolvable:$true] %s285
          %288 = dma.hbm_to_vmem [thread:$0]  %s283, 128, %s286, %s274
        $region40: #{tpu_custom_call.1} parent=31 // pred_fallthru
          _
      $region32: #{tpu_custom_call.1} parent=5 // pred_fallthru
        _
      %p289 = scmp.le.s32.totalorder 1, %s22
      %p290 = scmp.lt.s32.totalorder %s22, 3
      %p291 = pnand %p289, %p290
      %p292 = pneg %p291
      // Predicated region
      $region41: #{tpu_custom_call.1} parent=5 // pred_check
        _
      $region42: #{tpu_custom_call.1} parent=5 // pred_check_branch
        %294 = sbr.rel (%p291) target = $region44
      $region43: #{tpu_custom_call.1} parent=5 // pred_region
        %s295 = ssub.s32 %s22, 1
        %s296 = sand.u32 %s49, 1
        %s297 = scalar_lea.sflag [#allocation4], %s296
        %s298 = sand.u32 %s49, 1
        %s299 = smul.addr %s298, 8
        %s300 = scalar_lea.vmem [#allocation3], %s299
        // Predicated region
        $region45: #{tpu_custom_call.1} parent=43 // pred_check
          %p301 = pneg %p62
        $region46: #{tpu_custom_call.1} parent=43 // pred_check_branch
          %303 = sbr.rel (%p301) target = $region48
        $region47: #{tpu_custom_call.1} parent=43 // pred_region
          %304 = dma.done %s297, 128
        $region48: #{tpu_custom_call.1} parent=43 // pred_fallthru
          _
        %s305 = sand.u32 %s27, 1
        %s306 = scalar_lea.sflag [#allocation7], %s305
        %s307 = sand.u32 %s77, 1
        %s308 = smul.addr %s307, 8
        %s309 = scalar_lea.vmem [#allocation6], %s308
        // Predicated region
        $region49: #{tpu_custom_call.1} parent=43 // pred_check
          %p310 = pneg %p90
        $region50: #{tpu_custom_call.1} parent=43 // pred_check_branch
          %312 = sbr.rel (%p310) target = $region52
        $region51: #{tpu_custom_call.1} parent=43 // pred_region
          %313 = dma.done %s306, 128
        $region52: #{tpu_custom_call.1} parent=43 // pred_fallthru
          _
        // Predicated region
        $region53: #{tpu_custom_call.1} parent=43 // pred_check
          %p314 = pneg %p111
        $region54: #{tpu_custom_call.1} parent=43 // pred_check_branch
          %316 = sbr.rel (%p314) target = $region56
        $region55: #{tpu_custom_call.1} parent=43 // pred_region
          %317 = dma.done [#allocation7], 512
        $region56: #{tpu_custom_call.1} parent=43 // pred_fallthru
          _
        // Predicated region
        $region57: #{tpu_custom_call.1} parent=43 // pred_check
          %p318 = pneg %p153
        $region58: #{tpu_custom_call.1} parent=43 // pred_check_branch
          %320 = sbr.rel (%p318) target = $region60
        $region59: #{tpu_custom_call.1} parent=43 // pred_region
          %321 = dma.done [#allocation10], 512
        $region60: #{tpu_custom_call.1} parent=43 // pred_fallthru
          _
        %s322 = sand.u32 %s49, 1
        %s323 = scalar_lea.sflag [#allocation4], %s322
        %s324 = sand.u32 %s49, 1
        %s325 = smul.addr %s324, 8
        %s326 = scalar_lea.vmem [#allocation3], %s325
        %p327 = pneg %p62
        %p328 = pneg %p59
        %s329 = sand.u32 %s27, 1
        %s330 = scalar_lea.sflag [#allocation7], %s329
        %s331 = sand.u32 %s77, 1
        %s332 = smul.addr %s331, 8
        %s333 = scalar_lea.vmem [#allocation6], %s332
        %p334 = pneg %p90
        %p335 = pneg %p87
        %p336 = pneg %p111
        %p337 = pneg %p108
        %p338 = pneg %p132
        %p339 = pneg %p129
        %p340 = pneg %p153
        %p341 = pneg %p150
        %p342 = pneg %p174
        %p343 = pneg %p171
        %p344 = pneg %p200
        %p345 = pneg %p197
        %s346 = sand.u32 %s187, 1
        %s347 = scalar_lea.sflag [#allocation5], %s346
        %s348 = sand.u32 %s187, 1
        %s349 = smul.addr %s348, 128
        %s350 = scalar_lea.vmem [#allocation11], %s349
        %p351 = scmp.eq.s32.totalorder %s32, 0
        // Predicated region
        $region61: #{tpu_custom_call.1} parent=43 // pred_check
          %p352 = pneg %p351
        $region62: #{tpu_custom_call.1} parent=43 // pred_check_branch
          %354 = sbr.rel (%p352) target = $region64
        $region63: #{tpu_custom_call.1} parent=43 // pred_region
          %355 = vst [vmem:[#allocation2] sm:$0xff] 0.0
          %356 = vst [vmem:[#allocation2 + $0x8] sm:$0xff] 0.0
          %357 = vst [vmem:[#allocation2 + $0x10] sm:$0xff] 0.0
          %358 = vst [vmem:[#allocation2 + $0x18] sm:$0xff] 0.0
          %359 = vst [vmem:[#allocation2 + $0x20] sm:$0xff] 0.0
          %360 = vst [vmem:[#allocation2 + $0x28] sm:$0xff] 0.0
          %361 = vst [vmem:[#allocation2 + $0x30] sm:$0xff] 0.0
          %362 = vst [vmem:[#allocation2 + $0x38] sm:$0xff] 0.0
          %363 = vst [vmem:[#allocation2 + $0x40] sm:$0xff] 0.0
          %364 = vst [vmem:[#allocation2 + $0x48] sm:$0xff] 0.0
          %365 = vst [vmem:[#allocation2 + $0x50] sm:$0xff] 0.0
          %366 = vst [vmem:[#allocation2 + $0x58] sm:$0xff] 0.0
          %367 = vst [vmem:[#allocation2 + $0x60] sm:$0xff] 0.0
          %368 = vst [vmem:[#allocation2 + $0x68] sm:$0xff] 0.0
          %369 = vst [vmem:[#allocation2 + $0x70] sm:$0xff] 0.0
          %370 = vst [vmem:[#allocation2 + $0x78] sm:$0xff] 0.0
        $region64: #{tpu_custom_call.1} parent=43 // pred_fallthru
          _
        %v371 = vld [vmem:[%s300] sm:$0xff]
        %v372 = vld [vmem:[%s309] sm:$0xff]
        %v373 = vld [vmem:[#allocation8] sm:$0xff]
        %v374 = vld [vmem:[#allocation8 + $0x8] sm:$0xff]
        %v375 = vld [vmem:[#allocation8 + $0x10] sm:$0xff]
        %v376 = vld [vmem:[#allocation8 + $0x18] sm:$0xff]
        %v377 = vld [vmem:[#allocation9] sm:$0xff]
        %v378 = vld [vmem:[#allocation9 + $0x8] sm:$0xff]
        %v379 = vld [vmem:[#allocation9 + $0x10] sm:$0xff]
        %v380 = vld [vmem:[#allocation9 + $0x18] sm:$0xff]
        %v381 = vld [vmem:[%s3] sm:$0x1]
        %v383 = vlaneseq
        %v384 = vshrl.u32 %v383, 7
        %v385 = vsub.s32 0, %v384
        %v386 = vrot.slane %v381, %v385
        %vm388 = vcmask 261120
        %v390 = vsel %vm388, %v371, 0
        %392 = vmatprep.subr.mxu0 0.0
        %393 = vmatpush1.msra.mxu0 %v373
        %394 = vmatprep.subr.mxu0 0.0
        %395 = vmatpush1.msra.mxu0 %v374
        %396 = vmatprep.subr.mxu0 0.0
        %397 = vmatpush1.msra.mxu0 %v375
        %398 = vmatprep.subr.mxu0 0.0
        %399 = vmatpush1.msra.mxu0 %v376
        %400 = vmatprep.subr.mxu0 0.0
        %401 = vmatpush1.msra.mxu0 0.0
        %402 = vmatprep.subr.mxu0 0.0
        %403 = vmatpush1.msra.mxu0 0.0
        %404 = vmatprep.subr.mxu0 0.0
        %405 = vmatpush1.msra.mxu0 0.0
        %406 = vmatprep.subr.mxu0 0.0
        %407 = vmatpush1.msra.mxu0 0.0
        %408 = vmatprep.subr.mxu0 0.0
        %409 = vmatpush1.msra.mxu0 0.0
        %410 = vmatprep.subr.mxu0 0.0
        %411 = vmatpush1.msra.mxu0 0.0
        %412 = vmatprep.subr.mxu0 0.0
        %413 = vmatpush1.msra.mxu0 0.0
        %414 = vmatprep.subr.mxu0 0.0
        %415 = vmatpush1.msra.mxu0 0.0
        %416 = vmatprep.subr.mxu0 0.0
        %417 = vmatpush1.msra.mxu0 0.0
        %418 = vmatprep.subr.mxu0 0.0
        %419 = vmatpush1.msra.mxu0 0.0
        %420 = vmatprep.subr.mxu0 0.0
        %421 = vmatpush1.msra.mxu0 0.0
        %422 = vmatprep.subr.mxu0 0.0
        %423 = vmatpush1.msra.mxu0 0.0
        %424 = vmatprep.subr.mxu0 0.0
        %425 = vmatpush1.msra.mxu0 0.0
        %426 = vmatprep.subr.mxu0 0.0
        %427 = vmatpush1.msra.mxu0 0.0
        %428 = vmatprep.subr.mxu0 0.0
        %429 = vmatpush1.msra.mxu0 0.0
        %430 = vmatprep.subr.mxu0 0.0
        %431 = vmatpush1.msra.mxu0 0.0
        %432 = vmatprep.subr.mxu0 0.0
        %433 = vmatpush1.msra.mxu0 0.0
        %434 = vmatprep.subr.mxu0 0.0
        %435 = vmatpush1.msra.mxu0 0.0
        %436 = vmatprep.subr.mxu0 0.0
        %437 = vmatpush1.msra.mxu0 0.0
        %438 = vmatprep.subr.mxu0 0.0
        %439 = vmatpush1.msra.mxu0 0.0
        %440 = vmatprep.subr.mxu0 0.0
        %441 = vmatpush1.msra.mxu0 0.0
        %442 = vmatprep.subr.mxu0 0.0
        %443 = vmatpush1.msra.mxu0 0.0
        %444 = vmatprep.subr.mxu0 0.0
        %445 = vmatpush1.msra.mxu0 0.0
        %446 = vmatprep.subr.mxu0 0.0
        %447 = vmatpush1.msra.mxu0 0.0
        %448 = vmatprep.subr.mxu0 0.0
        %449 = vmatpush1.msra.mxu0 0.0
        %450 = vmatprep.subr.mxu0 0.0
        %451 = vmatpush1.msra.mxu0 0.0
        %452 = vmatprep.subr.mxu0 0.0
        %453 = vmatpush1.msra.mxu0 0.0
        %454 = vmatprep.subr.mxu0 0.0
        %455 = vmatpush1.msra.mxu0 0.0
        %456 = vmatprep.mubr.f32.mxu0 0.0
        %457 = vmatmul.mubr.f32.gmra.mrb[0].mxu0 %v390
        %v458 = vpop.f32.mrb[0].mxu0
        %v459 = vadd.f32 %v386, %v458
        %v460 = vpop.f32.mrb[0].mxu0
        %461 = vdwg.mxu0
        %v462 = vld [vmem:[%s5] sm:$0x1]
        %v464 = vlaneseq
        %v465 = vshrl.u32 %v464, 7
        %v466 = vsub.s32 0, %v465
        %v467 = vrot.slane %v462, %v466
        %v470 = vsel %vm388, %v372, 0
        %472 = vmatprep.subr.mxu0 0.0
        %473 = vmatpush1.msra.mxu0 %v377
        %474 = vmatprep.subr.mxu0 0.0
        %475 = vmatpush1.msra.mxu0 %v378
        %476 = vmatprep.subr.mxu0 0.0
        %477 = vmatpush1.msra.mxu0 %v379
        %478 = vmatprep.subr.mxu0 0.0
        %479 = vmatpush1.msra.mxu0 %v380
        %480 = vmatprep.subr.mxu0 0.0
        %481 = vmatpush1.msra.mxu0 0.0
        %482 = vmatprep.subr.mxu0 0.0
        %483 = vmatpush1.msra.mxu0 0.0
        %484 = vmatprep.subr.mxu0 0.0
        %485 = vmatpush1.msra.mxu0 0.0
        %486 = vmatprep.subr.mxu0 0.0
        %487 = vmatpush1.msra.mxu0 0.0
        %488 = vmatprep.subr.mxu0 0.0
        %489 = vmatpush1.msra.mxu0 0.0
        %490 = vmatprep.subr.mxu0 0.0
        %491 = vmatpush1.msra.mxu0 0.0
        %492 = vmatprep.subr.mxu0 0.0
        %493 = vmatpush1.msra.mxu0 0.0
        %494 = vmatprep.subr.mxu0 0.0
        %495 = vmatpush1.msra.mxu0 0.0
        %496 = vmatprep.subr.mxu0 0.0
        %497 = vmatpush1.msra.mxu0 0.0
        %498 = vmatprep.subr.mxu0 0.0
        %499 = vmatpush1.msra.mxu0 0.0
        %500 = vmatprep.subr.mxu0 0.0
        %501 = vmatpush1.msra.mxu0 0.0
        %502 = vmatprep.subr.mxu0 0.0
        %503 = vmatpush1.msra.mxu0 0.0
        %504 = vmatprep.subr.mxu0 0.0
        %505 = vmatpush1.msra.mxu0 0.0
        %506 = vmatprep.subr.mxu0 0.0
        %507 = vmatpush1.msra.mxu0 0.0
        %508 = vmatprep.subr.mxu0 0.0
        %509 = vmatpush1.msra.mxu0 0.0
        %510 = vmatprep.subr.mxu0 0.0
        %511 = vmatpush1.msra.mxu0 0.0
        %512 = vmatprep.subr.mxu0 0.0
        %513 = vmatpush1.msra.mxu0 0.0
        %514 = vmatprep.subr.mxu0 0.0
        %515 = vmatpush1.msra.mxu0 0.0
        %516 = vmatprep.subr.mxu0 0.0
        %517 = vmatpush1.msra.mxu0 0.0
        %518 = vmatprep.subr.mxu0 0.0
        %519 = vmatpush1.msra.mxu0 0.0
        %520 = vmatprep.subr.mxu0 0.0
        %521 = vmatpush1.msra.mxu0 0.0
        %522 = vmatprep.subr.mxu0 0.0
        %523 = vmatpush1.msra.mxu0 0.0
        %524 = vmatprep.subr.mxu0 0.0
        %525 = vmatpush1.msra.mxu0 0.0
        %526 = vmatprep.subr.mxu0 0.0
        %527 = vmatpush1.msra.mxu0 0.0
        %528 = vmatprep.subr.mxu0 0.0
        %529 = vmatpush1.msra.mxu0 0.0
        %530 = vmatprep.subr.mxu0 0.0
        %531 = vmatpush1.msra.mxu0 0.0
        %532 = vmatprep.subr.mxu0 0.0
        %533 = vmatpush1.msra.mxu0 0.0
        %534 = vmatprep.subr.mxu0 0.0
        %535 = vmatpush1.msra.mxu0 0.0
        %536 = vmatprep.mubr.f32.mxu0 0.0
        %537 = vmatmul.mubr.f32.gmra.mrb[0].mxu0 %v470
        %v538 = vpop.f32.mrb[0].mxu0
        %v539 = vadd.f32 %v467, %v538
        %v540 = vpop.f32.mrb[0].mxu0
        %541 = vdwg.mxu0
        %v542 = vld [vmem:[#allocation2] sm:$0xff]
        %v543 = vld [vmem:[#allocation2 + $0x8] sm:$0xff]
        %v544 = vld [vmem:[#allocation2 + $0x10] sm:$0xff]
        %v545 = vld [vmem:[#allocation2 + $0x18] sm:$0xff]
        %v546 = vld [vmem:[#allocation2 + $0x20] sm:$0xff]
        %v547 = vld [vmem:[#allocation2 + $0x28] sm:$0xff]
        %v548 = vld [vmem:[#allocation2 + $0x30] sm:$0xff]
        %v549 = vld [vmem:[#allocation2 + $0x38] sm:$0xff]
        %v550 = vld [vmem:[#allocation2 + $0x40] sm:$0xff]
        %v551 = vld [vmem:[#allocation2 + $0x48] sm:$0xff]
        %v552 = vld [vmem:[#allocation2 + $0x50] sm:$0xff]
        %v553 = vld [vmem:[#allocation2 + $0x58] sm:$0xff]
        %v554 = vld [vmem:[#allocation2 + $0x60] sm:$0xff]
        %v555 = vld [vmem:[#allocation2 + $0x68] sm:$0xff]
        %v556 = vld [vmem:[#allocation2 + $0x70] sm:$0xff]
        %v557 = vld [vmem:[#allocation2 + $0x78] sm:$0xff]
        %558 = vxpose.xlu0.b32.start [1/16] %v459, 128
        %559 = vxpose.xlu0.b32.cont [2/16] 0.0, 128
        %560 = vxpose.xlu0.b32.cont [3/16] 0.0, 128
        %561 = vxpose.xlu0.b32.cont [4/16] 0.0, 128
        %562 = vxpose.xlu0.b32.cont [5/16] 0.0, 128
        %563 = vxpose.xlu0.b32.cont [6/16] 0.0, 128
        %564 = vxpose.xlu0.b32.cont [7/16] 0.0, 128
        %565 = vxpose.xlu0.b32.cont [8/16] 0.0, 128
        %566 = vxpose.xlu0.b32.cont [9/16] 0.0, 128
        %567 = vxpose.xlu0.b32.cont [10/16] 0.0, 128
        %568 = vxpose.xlu0.b32.cont [11/16] 0.0, 128
        %569 = vxpose.xlu0.b32.cont [12/16] 0.0, 128
        %570 = vxpose.xlu0.b32.cont [13/16] 0.0, 128
        %571 = vxpose.xlu0.b32.cont [14/16] 0.0, 128
        %572 = vxpose.xlu0.b32.cont [15/16] 0.0, 128
        %573 = vxpose.xlu0.b32.end [16/16] 0.0, 128
        %v574 = vpop.trf.xlu0
        %v575 = vpop.trf.xlu0
        %v576 = vpop.trf.xlu0
        %v577 = vpop.trf.xlu0
        %v578 = vpop.trf.xlu0
        %v579 = vpop.trf.xlu0
        %v580 = vpop.trf.xlu0
        %v581 = vpop.trf.xlu0
        %v582 = vpop.trf.xlu0
        %v583 = vpop.trf.xlu0
        %v584 = vpop.trf.xlu0
        %v585 = vpop.trf.xlu0
        %v586 = vpop.trf.xlu0
        %v587 = vpop.trf.xlu0
        %v588 = vpop.trf.xlu0
        %v589 = vpop.trf.xlu0
        %vm590 = vcmask 64512
        %v592 = vsel %vm590, %v574, 0
        %v595 = vsel %vm590, %v575, 0
        %v598 = vsel %vm590, %v576, 0
        %v601 = vsel %vm590, %v577, 0
        %v604 = vsel %vm590, %v578, 0
        %v607 = vsel %vm590, %v579, 0
        %v610 = vsel %vm590, %v580, 0
        %v613 = vsel %vm590, %v581, 0
        %v616 = vsel %vm590, %v582, 0
        %v619 = vsel %vm590, %v583, 0
        %v622 = vsel %vm590, %v584, 0
        %v625 = vsel %vm590, %v585, 0
        %v628 = vsel %vm590, %v586, 0
        %v631 = vsel %vm590, %v587, 0
        %v634 = vsel %vm590, %v588, 0
        %v637 = vsel %vm590, %v589, 0
        %639 = vmatprep.subr.mxu0 0.0
        %640 = vmatpush1.msra.mxu0 %v539
        %641 = vmatprep.subr.mxu0 0.0
        %642 = vmatpush1.msra.mxu0 0.0
        %643 = vmatprep.subr.mxu0 0.0
        %644 = vmatpush1.msra.mxu0 0.0
        %645 = vmatprep.subr.mxu0 0.0
        %646 = vmatpush1.msra.mxu0 0.0
        %647 = vmatprep.subr.mxu0 0.0
        %648 = vmatpush1.msra.mxu0 0.0
        %649 = vmatprep.subr.mxu0 0.0
        %650 = vmatpush1.msra.mxu0 0.0
        %651 = vmatprep.subr.mxu0 0.0
        %652 = vmatpush1.msra.mxu0 0.0
        %653 = vmatprep.subr.mxu0 0.0
        %654 = vmatpush1.msra.mxu0 0.0
        %655 = vmatprep.subr.mxu0 0.0
        %656 = vmatpush1.msra.mxu0 0.0
        %657 = vmatprep.subr.mxu0 0.0
        %658 = vmatpush1.msra.mxu0 0.0
        %659 = vmatprep.subr.mxu0 0.0
        %660 = vmatpush1.msra.mxu0 0.0
        %661 = vmatprep.subr.mxu0 0.0
        %662 = vmatpush1.msra.mxu0 0.0
        %663 = vmatprep.subr.mxu0 0.0
        %664 = vmatpush1.msra.mxu0 0.0
        %665 = vmatprep.subr.mxu0 0.0
        %666 = vmatpush1.msra.mxu0 0.0
        %667 = vmatprep.subr.mxu0 0.0
        %668 = vmatpush1.msra.mxu0 0.0
        %669 = vmatprep.subr.mxu0 0.0
        %670 = vmatpush1.msra.mxu0 0.0
        %671 = vmatprep.subr.mxu0 0.0
        %672 = vmatpush1.msra.mxu0 0.0
        %673 = vmatprep.subr.mxu0 0.0
        %674 = vmatpush1.msra.mxu0 0.0
        %675 = vmatprep.subr.mxu0 0.0
        %676 = vmatpush1.msra.mxu0 0.0
        %677 = vmatprep.subr.mxu0 0.0
        %678 = vmatpush1.msra.mxu0 0.0
        %679 = vmatprep.subr.mxu0 0.0
        %680 = vmatpush1.msra.mxu0 0.0
        %681 = vmatprep.subr.mxu0 0.0
        %682 = vmatpush1.msra.mxu0 0.0
        %683 = vmatprep.subr.mxu0 0.0
        %684 = vmatpush1.msra.mxu0 0.0
        %685 = vmatprep.subr.mxu0 0.0
        %686 = vmatpush1.msra.mxu0 0.0
        %687 = vmatprep.subr.mxu0 0.0
        %688 = vmatpush1.msra.mxu0 0.0
        %689 = vmatprep.subr.mxu0 0.0
        %690 = vmatpush1.msra.mxu0 0.0
        %691 = vmatprep.subr.mxu0 0.0
        %692 = vmatpush1.msra.mxu0 0.0
        %693 = vmatprep.subr.mxu0 0.0
        %694 = vmatpush1.msra.mxu0 0.0
        %695 = vmatprep.subr.mxu0 0.0
        %696 = vmatpush1.msra.mxu0 0.0
        %697 = vmatprep.subr.mxu0 0.0
        %698 = vmatpush1.msra.mxu0 0.0
        %699 = vmatprep.subr.mxu0 0.0
        %700 = vmatpush1.msra.mxu0 0.0
        %701 = vmatprep.subr.mxu0 0.0
        %702 = vmatpush1.msra.mxu0 0.0
        %703 = vmatprep.mubr.f32.mxu0 0.0
        %704 = vmatmul.mubr.f32.gmra.mrb[0].mxu0 %v592
        %v705 = vpop.f32.mrb[0].mxu0
        %v706 = vadd.f32 0.0, %v705
        %v707 = vpop.f32.mrb[0].mxu0
        %708 = vmatprep.mubr.f32.mxu0 0.0
        %709 = vmatmul.mubr.f32.gmra.mrb[0].mxu0 %v595
        %v710 = vpop.f32.mrb[0].mxu0
        %v711 = vadd.f32 0.0, %v710
        %v712 = vpop.f32.mrb[0].mxu0
        %713 = vmatprep.mubr.f32.mxu0 0.0
        %714 = vmatmul.mubr.f32.gmra.mrb[0].mxu0 %v598
        %v715 = vpop.f32.mrb[0].mxu0
        %v716 = vadd.f32 0.0, %v715
        %v717 = vpop.f32.mrb[0].mxu0
        %718 = vmatprep.mubr.f32.mxu0 0.0
        %719 = vmatmul.mubr.f32.gmra.mrb[0].mxu0 %v601
        %v720 = vpop.f32.mrb[0].mxu0
        %v721 = vadd.f32 0.0, %v720
        %v722 = vpop.f32.mrb[0].mxu0
        %723 = vmatprep.mubr.f32.mxu0 0.0
        %724 = vmatmul.mubr.f32.gmra.mrb[0].mxu0 %v604
        %v725 = vpop.f32.mrb[0].mxu0
        %v726 = vadd.f32 0.0, %v725
        %v727 = vpop.f32.mrb[0].mxu0
        %728 = vmatprep.mubr.f32.mxu0 0.0
        %729 = vmatmul.mubr.f32.gmra.mrb[0].mxu0 %v607
        %v730 = vpop.f32.mrb[0].mxu0
        %v731 = vadd.f32 0.0, %v730
        %v732 = vpop.f32.mrb[0].mxu0
        %733 = vmatprep.mubr.f32.mxu0 0.0
        %734 = vmatmul.mubr.f32.gmra.mrb[0].mxu0 %v610
        %v735 = vpop.f32.mrb[0].mxu0
        %v736 = vadd.f32 0.0, %v735
        %v737 = vpop.f32.mrb[0].mxu0
        %738 = vmatprep.mubr.f32.mxu0 0.0
        %739 = vmatmul.mubr.f32.gmra.mrb[0].mxu0 %v613
        %v740 = vpop.f32.mrb[0].mxu0
        %v741 = vadd.f32 0.0, %v740
        %v742 = vpop.f32.mrb[0].mxu0
        %743 = vmatprep.mubr.f32.mxu0 0.0
        %744 = vmatmul.mubr.f32.gmra.mrb[0].mxu0 %v616
        %v745 = vpop.f32.mrb[0].mxu0
        %v746 = vadd.f32 0.0, %v745
        %v747 = vpop.f32.mrb[0].mxu0
        %748 = vmatprep.mubr.f32.mxu0 0.0
        %749 = vmatmul.mubr.f32.gmra.mrb[0].mxu0 %v619
        %v750 = vpop.f32.mrb[0].mxu0
        %v751 = vadd.f32 0.0, %v750
        %v752 = vpop.f32.mrb[0].mxu0
        %753 = vmatprep.mubr.f32.mxu0 0.0
        %754 = vmatmul.mubr.f32.gmra.mrb[0].mxu0 %v622
        %v755 = vpop.f32.mrb[0].mxu0
        %v756 = vadd.f32 0.0, %v755
        %v757 = vpop.f32.mrb[0].mxu0
        %758 = vmatprep.mubr.f32.mxu0 0.0
        %759 = vmatmul.mubr.f32.gmra.mrb[0].mxu0 %v625
        %v760 = vpop.f32.mrb[0].mxu0
        %v761 = vadd.f32 0.0, %v760
        %v762 = vpop.f32.mrb[0].mxu0
        %763 = vmatprep.mubr.f32.mxu0 0.0
        %764 = vmatmul.mubr.f32.gmra.mrb[0].mxu0 %v628
        %v765 = vpop.f32.mrb[0].mxu0
        %v766 = vadd.f32 0.0, %v765
        %v767 = vpop.f32.mrb[0].mxu0
        %768 = vmatprep.mubr.f32.mxu0 0.0
        %769 = vmatmul.mubr.f32.gmra.mrb[0].mxu0 %v631
        %v770 = vpop.f32.mrb[0].mxu0
        %v771 = vadd.f32 0.0, %v770
        %v772 = vpop.f32.mrb[0].mxu0
        %773 = vmatprep.mubr.f32.mxu0 0.0
        %774 = vmatmul.mubr.f32.gmra.mrb[0].mxu0 %v634
        %v775 = vpop.f32.mrb[0].mxu0
        %v776 = vadd.f32 0.0, %v775
        %v777 = vpop.f32.mrb[0].mxu0
        %778 = vmatprep.mubr.f32.mxu0 0.0
        %779 = vmatmul.mubr.f32.gmra.mrb[0].mxu0 %v637
        %v780 = vpop.f32.mrb[0].mxu0
        %v781 = vadd.f32 0.0, %v780
        %v782 = vpop.f32.mrb[0].mxu0
        %783 = vdwg.mxu0
        %v784 = vadd.f32 %v542, %v706
        %v785 = vadd.f32 %v543, %v711
        %v786 = vadd.f32 %v544, %v716
        %v787 = vadd.f32 %v545, %v721
        %v788 = vadd.f32 %v546, %v726
        %v789 = vadd.f32 %v547, %v731
        %v790 = vadd.f32 %v548, %v736
        %v791 = vadd.f32 %v549, %v741
        %v792 = vadd.f32 %v550, %v746
        %v793 = vadd.f32 %v551, %v751
        %v794 = vadd.f32 %v552, %v756
        %v795 = vadd.f32 %v553, %v761
        %v796 = vadd.f32 %v554, %v766
        %v797 = vadd.f32 %v555, %v771
        %v798 = vadd.f32 %v556, %v776
        %v799 = vadd.f32 %v557, %v781
        %800 = vst [vmem:[#allocation2] sm:$0xff] %v784
        %801 = vst [vmem:[#allocation2 + $0x8] sm:$0xff] %v785
        %802 = vst [vmem:[#allocation2 + $0x10] sm:$0xff] %v786
        %803 = vst [vmem:[#allocation2 + $0x18] sm:$0xff] %v787
        %804 = vst [vmem:[#allocation2 + $0x20] sm:$0xff] %v788
        %805 = vst [vmem:[#allocation2 + $0x28] sm:$0xff] %v789
        %806 = vst [vmem:[#allocation2 + $0x30] sm:$0xff] %v790
        %807 = vst [vmem:[#allocation2 + $0x38] sm:$0xff] %v791
        %808 = vst [vmem:[#allocation2 + $0x40] sm:$0xff] %v792
        %809 = vst [vmem:[#allocation2 + $0x48] sm:$0xff] %v793
        %810 = vst [vmem:[#allocation2 + $0x50] sm:$0xff] %v794
        %811 = vst [vmem:[#allocation2 + $0x58] sm:$0xff] %v795
        %812 = vst [vmem:[#allocation2 + $0x60] sm:$0xff] %v796
        %813 = vst [vmem:[#allocation2 + $0x68] sm:$0xff] %v797
        %814 = vst [vmem:[#allocation2 + $0x70] sm:$0xff] %v798
        %815 = vst [vmem:[#allocation2 + $0x78] sm:$0xff] %v799
        // Predicated region
        $region65: #{tpu_custom_call.1} parent=43 // pred_check
          %p816 = pneg %p351
        $region66: #{tpu_custom_call.1} parent=43 // pred_check_branch
          %818 = sbr.rel (%p816) target = $region68
        $region67: #{tpu_custom_call.1} parent=43 // pred_region
          %v819 = vld [vmem:[#allocation2] sm:$0xff]
          %v820 = vld [vmem:[#allocation2 + $0x8] sm:$0xff]
          %v821 = vld [vmem:[#allocation2 + $0x10] sm:$0xff]
          %v822 = vld [vmem:[#allocation2 + $0x18] sm:$0xff]
          %v823 = vld [vmem:[#allocation2 + $0x20] sm:$0xff]
          %v824 = vld [vmem:[#allocation2 + $0x28] sm:$0xff]
          %v825 = vld [vmem:[#allocation2 + $0x30] sm:$0xff]
          %v826 = vld [vmem:[#allocation2 + $0x38] sm:$0xff]
          %v827 = vld [vmem:[#allocation2 + $0x40] sm:$0xff]
          %v828 = vld [vmem:[#allocation2 + $0x48] sm:$0xff]
          %v829 = vld [vmem:[#allocation2 + $0x50] sm:$0xff]
          %v830 = vld [vmem:[#allocation2 + $0x58] sm:$0xff]
          %v831 = vld [vmem:[#allocation2 + $0x60] sm:$0xff]
          %v832 = vld [vmem:[#allocation2 + $0x68] sm:$0xff]
          %v833 = vld [vmem:[#allocation2 + $0x70] sm:$0xff]
          %v834 = vld [vmem:[#allocation2 + $0x78] sm:$0xff]
          %835 = vst [vmem:[%s350] sm:$0xff] %v819
          %836 = vst [vmem:[%s350 + $0x8] sm:$0xff] %v820
          %837 = vst [vmem:[%s350 + $0x10] sm:$0xff] %v821
          %838 = vst [vmem:[%s350 + $0x18] sm:$0xff] %v822
          %839 = vst [vmem:[%s350 + $0x20] sm:$0xff] %v823
          %840 = vst [vmem:[%s350 + $0x28] sm:$0xff] %v824
          %841 = vst [vmem:[%s350 + $0x30] sm:$0xff] %v825
          %842 = vst [vmem:[%s350 + $0x38] sm:$0xff] %v826
          %843 = vst [vmem:[%s350 + $0x40] sm:$0xff] %v827
          %844 = vst [vmem:[%s350 + $0x48] sm:$0xff] %v828
          %845 = vst [vmem:[%s350 + $0x50] sm:$0xff] %v829
          %846 = vst [vmem:[%s350 + $0x58] sm:$0xff] %v830
          %847 = vst [vmem:[%s350 + $0x60] sm:$0xff] %v831
          %848 = vst [vmem:[%s350 + $0x68] sm:$0xff] %v832
          %849 = vst [vmem:[%s350 + $0x70] sm:$0xff] %v833
          %850 = vst [vmem:[%s350 + $0x78] sm:$0xff] %v834
        $region68: #{tpu_custom_call.1} parent=43 // pred_fallthru
          _
        %s851 = sand.u32 %s187, 1
        %s852 = scalar_lea.sflag [#allocation5], %s851
        %s853 = sand.u32 %s187, 1
        %s854 = smul.addr %s853, 128
        %s855 = scalar_lea.vmem [#allocation11], %s854
        // Predicated region
        $region69: #{tpu_custom_call.1} parent=43 // pred_check
          %p856 = pneg %p197
        $region70: #{tpu_custom_call.1} parent=43 // pred_check_branch
          %858 = sbr.rel (%p856) target = $region72
        $region71: #{tpu_custom_call.1} parent=43 // pred_region
          %s860 = ssub.s32 2048, 2048
          %861 = vsyncadd %s852, %s860
          %s862 = smul.addr %s31, 16
          %s863 = smul.addr %s862, 128
          %s864 = scalar_lea.hbm %s6, %s863
          %s865 = sshll.u32 %s855, 4
          %s866 = int_to_ptr.vmem [resolvable:$true] %s865
          %871 = dma.vmem_to_hbm [thread:$0]  %s866, 2048, %s864, %s852, 128, 128, 8
        $region72: #{tpu_custom_call.1} parent=43 // pred_fallthru
          _
      $region44: #{tpu_custom_call.1} parent=5 // pred_fallthru
        _
      %p872 = scmp.le.s32.totalorder 2, %s22
      // Predicated region
      $region73: #{tpu_custom_call.1} parent=5 // pred_check
        %p873 = pneg %p872
      $region74: #{tpu_custom_call.1} parent=5 // pred_check_branch
        %875 = sbr.rel (%p873) target = $region76
      $region75: #{tpu_custom_call.1} parent=5 // pred_region
        %s876 = ssub.s32 %s22, 2
        // Predicated region
        $region77: #{tpu_custom_call.1} parent=75 // pred_check
          %p877 = pneg %p203
        $region78: #{tpu_custom_call.1} parent=75 // pred_check_branch
          %879 = sbr.rel (%p877) target = $region80
        $region79: #{tpu_custom_call.1} parent=75 // pred_region
          %s880 = sand.u32 %s188, 1
          %s881 = scalar_lea.sflag [#allocation5], %s880
          %s882 = sand.u32 %s188, 1
          %s883 = smul.addr %s882, 128
          %s884 = scalar_lea.vmem [#allocation11], %s883
          %885 = dma.done %s881, 2048
        $region80: #{tpu_custom_call.1} parent=75 // pred_fallthru
          _
      $region76: #{tpu_custom_call.1} parent=5 // pred_fallthru
        _
    $region6: #{tpu_custom_call.1} parent=1 // loop_footer
      %s26 = sadd.s32 1, %s22
    $region7: #{tpu_custom_call.1} parent=1 // loop_footer_branch
      %21 = sbr.rel target = $region3
    $region8: #{tpu_custom_call.1} parent=1 // loop_exit
      _
    %886 = vsyncpa [#allocation4], 1
    %s887 = scalar_lea.sflag [#allocation4], 1
    %888 = vsyncpa %s887, 1
    %889 = vsyncpa [#allocation7], 1
    %s890 = scalar_lea.sflag [#allocation7], 1
    %891 = vsyncpa %s890, 1
    %892 = vsyncpa [#allocation10], 1
    %893 = vsyncpa [#allocation5], 1
    %s894 = scalar_lea.sflag [#allocation5], 1
    %895 = vsyncpa %s894, 1

</llo_original>
